<compile_context>
chip_gen: v7x
topology: tpu7x:2x2x1
jax: 0.10.0
libtpu: 0.0.40
codegen_flags: <defaults>
</compile_context>

<pallas_src>
import functools
import math

import numpy as np
import jax
import jax.numpy as jnp
from jax import lax
from jax.experimental import pallas as pl
from jax.experimental.pallas import tpu as pltpu


def _round_up(a, b):
    return ((a + b - 1) // b) * b


def _vmem_capacity_bytes():
    try:
        return int(pltpu.get_tpu_info().vmem_capacity_bytes)
    except Exception:
        return 64 * 2**20          # v7x-safe fallback


# ---------------------------------------------------------------------------
# Conv path: 3x3 conv, stride 2, padding 1  (Downsample(use_conv=True, dims=2))
# ---------------------------------------------------------------------------
def _conv3x3s2_kernel(band_ref, w_ref, b_ref, o_ref, lhs_ref, *,
                      t_ho, wo, cinp, co_t, w_resident):
    # band_ref: (t_ho+1, 2, Wo+1, 2*Cinp) halo'd, parity-folded row band (auto-pipelined)
    # w_ref:    (9*Cinp, Coutp) resident   OR   (9*Cinp, co_t) per-Cout-tile
    # b_ref:    (1, co_t) f32 bias
    # o_ref:    (1, P_t, co_t) lane-dense output tile
    # lhs_ref:  (P_t, 9*Cinp) VMEM scratch: mini-im2col, built once per band
    c = pl.program_id(2)
    pt = t_ho * wo

    # Unpack the band into the fused-contraction LHS once per (n, h); reuse it
    # for every Cout tile (c is the innermost, sequential "arbitrary" axis).
    @pl.when(c == 0)
    def _():
        taps = []
        for kh in range(3):
            dh, ph = kh // 2, kh % 2          # padded row 2*ho+kh == band[ho+dh, ph]
            for kw in range(3):
                dj, q = kw // 2, kw % 2       # padded col 2*wo+kw == group wo+dj, half q
                tap = band_ref[pl.ds(dh, t_ho), ph, pl.ds(dj, wo),
                               pl.ds(q * cinp, cinp)]            # (t_ho, Wo, Cinp)
                taps.append(tap.reshape(pt, cinp))
        lhs_ref[...] = jnp.concatenate(taps, axis=-1)            # (P_t, 9*Cinp)

    if w_resident:
        off = pl.multiple_of(c * co_t, 128)
        wblk = w_ref[:, pl.ds(off, co_t)]                        # (9*Cinp, co_t)
    else:
        wblk = w_ref[...]
    acc = jnp.dot(lhs_ref[...], wblk, preferred_element_type=jnp.float32)
    o_ref[0] = (acc + b_ref[...]).astype(o_ref.dtype)


def downsample_conv(x_nchw, weight_oihw, bias):
    """3x3 stride-2 pad-1 conv; matches nn.Conv2d(channels, out_channels, 3, 2, 1)."""
    N, Cin, H, W = x_nchw.shape
    Cout = weight_oihw.shape[0]
    dtype = x_nchw.dtype
    itemsize = jnp.dtype(dtype).itemsize

    Ho = (H - 1) // 2 + 1
    Wo = (W - 1) // 2 + 1

    vmem_cap = _vmem_capacity_bytes()
    big_vmem = vmem_cap > 96 * 2**20                      # v5e/v6e (128 MiB) vs v7x (64 MiB)

    # ---- tiling --------------------------------------------------------------
    Cinp = _round_up(Cin, 8)                              # sublane-friendly contraction dim
    Coutp = _round_up(Cout, 128)                          # lane-dense output channels
    co_t = 256 if (Coutp % 256 == 0) else 128             # wide N tiles for 256-wide MXUs
    n_co = Coutp // co_t

    # output-row tile: ~256 matmul rows, t_ho*Wo a multiple of 8, bounded VMEM
    lcm8 = 8 // math.gcd(Wo, 8)
    t_ho = _round_up(min(Ho, max(1, 256 // max(Wo, 1))), lcm8)

    def _act_bytes(th):                                   # band (x2 bufs) + im2col LHS (x3)
        band = (th + 1) * 2 * _round_up(Wo + 1, 8) * _round_up(2 * Cinp, 128) * itemsize
        lhs = _round_up(th * Wo, 8) * _round_up(9 * Cinp, 128) * itemsize
        return 2 * band + 3 * lhs

    act_cap = (32 * 2**20) if big_vmem else (16 * 2**20)
    while t_ho > lcm8 and _act_bytes(t_ho) > act_cap:
        t_ho -= lcm8
    n_ho = pl.cdiv(Ho, t_ho)

    # v7x: make sure the parallel grid axes expose >= 2 units for the 2 TensorCores.
    if N * n_ho < 2:
        t2 = _round_up(max(lcm8, pl.cdiv(Ho, 2)), lcm8)
        if t2 < t_ho:
            t_ho, n_ho = t2, pl.cdiv(Ho, t2)

    Ho_p = n_ho * t_ho
    P_t = t_ho * Wo

    # ---- padded, parity-folded input (pad + pure reshape; no HBM im2col) ------
    x_nhwc = jnp.transpose(x_nchw, (0, 2, 3, 1))          # (N, H, W, Cin)
    if Cinp != Cin:
        x_nhwc = jnp.pad(x_nhwc, ((0, 0), (0, 0), (0, 0), (0, Cinp - Cin)))
    Hp = 2 * Ho_p + 2
    Wp = 2 * (Wo + 1)
    x_pad = jnp.pad(x_nhwc, ((0, 0), (1, Hp - H - 1), (1, Wp - W - 1), (0, 0)))
    # x_r[n, i, p, j, q*Cinp + c] == x_pad[n, 2i+p, 2j+q, c]
    x_r = x_pad.reshape(N, Ho_p + 1, 2, Wo + 1, 2 * Cinp)

    # Per-row-tile halo'd bands (one duplicated halo row per band) so the band
    # becomes a plain Blocked window -> Pallas auto-pipelines the band DMA.
    if n_ho == 1:
        x_b = x_r.reshape(N, 1, Ho_p + 1, 2, Wo + 1, 2 * Cinp)
    else:
        row_idx = (np.arange(n_ho)[:, None] * t_ho
                   + np.arange(t_ho + 1)[None, :]).reshape(-1)
        x_b = x_r[:, row_idx].reshape(N, n_ho, t_ho + 1, 2, Wo + 1, 2 * Cinp)

    # ---- weights: (Cout, Cin, 3, 3) -> (9*Cinp, Coutp), K = (kh*3+kw)*Cinp + ci
    # NOTE: weights are cast to the activation dtype (f32 accumulation in-kernel);
    # with bf16 activations this is standard mixed precision.
    w = jnp.transpose(weight_oihw, (2, 3, 1, 0))          # (3, 3, Cin, Cout)
    w = jnp.pad(w, ((0, 0), (0, 0), (0, Cinp - Cin), (0, Coutp - Cout)))
    w = w.reshape(9 * Cinp, Coutp).astype(dtype)
    b = jnp.pad(bias, (0, Coutp - Cout)).reshape(1, Coutp).astype(jnp.float32)

    w_bytes = 9 * Cinp * Coutp * itemsize
    w_res_cap = (24 * 2**20) if big_vmem else (8 * 2**20)
    w_resident = (2 * w_bytes) <= w_res_cap               # budget incl. double-buffer

    # ---- VMEM budget / cost hint ----------------------------------------------
    w_block = _round_up(9 * Cinp, 8) * (Coutp if w_resident else co_t) * itemsize
    o_block = P_t * co_t * itemsize
    need = (_act_bytes(t_ho) + 2 * w_block + 2 * o_block
            + P_t * co_t * 4 + 2 * 8 * co_t * 4)
    vmem_limit = int(min(max(need + 8 * 2**20, 32 * 2**20), (7 * vmem_cap) // 8))

    flops = 2 * N * Ho_p * Wo * 9 * Cinp * Coutp
    bytes_accessed = (x_b.size * itemsize
                      + w.size * itemsize * (1 if w_resident else N * n_ho)
                      + N * Ho_p * Wo * Coutp * itemsize)

    kernel = functools.partial(_conv3x3s2_kernel, t_ho=t_ho, wo=Wo, cinp=Cinp,
                               co_t=co_t, w_resident=w_resident)

    if w_resident:
        w_spec = pl.BlockSpec((9 * Cinp, Coutp), lambda n, h, c: (0, 0))
    else:
        w_spec = pl.BlockSpec((9 * Cinp, co_t), lambda n, h, c: (0, c))

    out = pl.pallas_call(
        kernel,
        out_shape=jax.ShapeDtypeStruct((N, Ho_p * Wo, Coutp), dtype),
        grid=(N, n_ho, n_co),
        in_specs=[
            pl.BlockSpec((None, None, t_ho + 1, 2, Wo + 1, 2 * Cinp),
                         lambda n, h, c: (n, h, 0, 0, 0, 0)),       # halo'd band
            w_spec,                                                 # weights
            pl.BlockSpec((1, co_t), lambda n, h, c: (0, c)),        # f32 bias
        ],
        out_specs=pl.BlockSpec((1, P_t, co_t), lambda n, h, c: (n, h, c)),
        scratch_shapes=[pltpu.VMEM((P_t, 9 * Cinp), dtype)],        # mini-im2col LHS
        compiler_params=pltpu.CompilerParams(
            dimension_semantics=("parallel", "parallel", "arbitrary"),
            vmem_limit_bytes=vmem_limit),
        cost_estimate=pl.CostEstimate(flops=flops, transcendentals=0,
                                      bytes_accessed=bytes_accessed),
    )(x_b, w, b)

    out = out.reshape(N, Ho_p, Wo, Coutp)[:, :Ho, :, :Cout]
    return jnp.transpose(out, (0, 3, 1, 2))               # back to NCHW


# ---------------------------------------------------------------------------
# Avg-pool path: 2x2 avg pool, stride 2  (Downsample(use_conv=False, dims=2))
# ---------------------------------------------------------------------------
def _avgpool2x2_kernel(x_ref, o_ref, *, h, w):
    # x_ref: (bc, h*w)  one row per (n, c) image, spatial flattened (lane-dense)
    # o_ref: (bc, (h//2)*(w//2))
    bc = x_ref.shape[0]
    ho, wo = h // 2, w // 2
    v = x_ref[...].astype(jnp.float32).reshape(bc * ho, 2 * w)
    rsum = v[:, :w] + v[:, w:]                          # vertical 2-row sum
    csum = rsum.reshape(bc * ho, wo, 2).sum(axis=-1)    # horizontal 2-col sum
    o_ref[...] = (0.25 * csum).reshape(bc, ho * wo).astype(o_ref.dtype)


def downsample_avgpool(x_nchw):
    """2x2 stride-2 average pool; matches nn.AvgPool2d(kernel_size=2, stride=2)."""
    N, C, H, W = x_nchw.shape
    Ho, Wo = H // 2, W // 2
    if (H % 2) or (W % 2):                 # AvgPool2d(2,2) floors odd spatial dims
        x_nchw = x_nchw[:, :, :2 * Ho, :2 * Wo]
        H, W = 2 * Ho, 2 * Wo
    M = N * C
    x2 = x_nchw.reshape(M, H * W)          # pure reshape, no strided copies

    itemsize = jnp.dtype(x_nchw.dtype).itemsize
    vmem_cap = _vmem_capacity_bytes()
    big_vmem = vmem_cap > 96 * 2**20
    f32_row = H * W * 4
    blk_budget = (8 * 2**20) if big_vmem else (4 * 2**20)
    bc = max(1, min(M, blk_budget // max(f32_row, 1)))
    if bc < M:
        bc = max(8, (bc // 8) * 8)         # keep block sublane dim a multiple of 8
    n_blk = pl.cdiv(M, bc)

    need = 2 * bc * (H * W + Ho * Wo) * itemsize + 4 * bc * f32_row
    vmem_limit = int(min(max(need + 8 * 2**20, 32 * 2**20), (7 * vmem_cap) // 8))

    kernel = functools.partial(_avgpool2x2_kernel, h=H, w=W)
    out2 = pl.pallas_call(
        kernel,
        out_shape=jax.ShapeDtypeStruct((M, Ho * Wo), x_nchw.dtype),
        grid=(n_blk,),
        in_specs=[pl.BlockSpec((bc, H * W), lambda i: (i, 0))],
        out_specs=pl.BlockSpec((bc, Ho * Wo), lambda i: (i, 0)),
        compiler_params=pltpu.CompilerParams(
            dimension_semantics=("parallel",),
            vmem_limit_bytes=vmem_limit),
    )(x2)
    return out2.reshape(N, C, Ho, Wo)


# ---------------------------------------------------------------------------
# Module-equivalent wrapper
# ---------------------------------------------------------------------------
class DownsamplePallas:
    def __init__(self, channels, use_conv, dims=2, out_channels=None, key=None):
        assert dims == 2, "only dims=2 implemented here"
        self.channels = channels
        self.out_channels = out_channels or channels
        self.use_conv = use_conv
        if use_conv:
            key = key if key is not None else jax.random.PRNGKey(0)
            kw, kb = jax.random.split(key)
            fan_in = channels * 3 * 3
            bound = 1.0 / (fan_in ** 0.5)
            self.weight = jax.random.uniform(
                kw, (self.out_channels, channels, 3, 3),
                minval=-bound, maxval=bound, dtype=jnp.float32)
            self.bias = jax.random.uniform(
                kb, (self.out_channels,), minval=-bound, maxval=bound,
                dtype=jnp.float32)
        else:
            assert self.channels == self.out_channels

    def __call__(self, x_nchw):
        assert x_nchw.shape[1] == self.channels
        if self.use_conv:
            return downsample_conv(x_nchw, self.weight, self.bias)
        return downsample_avgpool(x_nchw)


if __name__ == "__main__":
    key = jax.random.PRNGKey(0)
    kx, kp = jax.random.split(key)

    N, C, H, W = 2, 4, 16, 16
    x = jax.random.normal(kx, (N, C, H, W), dtype=jnp.float32)

    # --- conv path (use_conv=True) ---
    mod_conv = DownsamplePallas(channels=C, use_conv=True, dims=2,
                                out_channels=C, key=kp)
    y_conv = jax.block_until_ready(mod_conv(x))
    assert y_conv.shape == (N, C, H // 2, W // 2), y_conv.shape

    # reference: XLA conv
    y_ref = lax.conv_general_dilated(
        x, mod_conv.weight, window_strides=(2, 2),
        padding=((1, 1), (1, 1)),
        dimension_numbers=("NCHW", "OIHW", "NCHW"),
    ) + mod_conv.bias[None, :, None, None]
    assert jnp.allclose(y_conv, y_ref, atol=1e-4, rtol=1e-4)

    # --- avg-pool path (use_conv=False) ---
    mod_pool = DownsamplePallas(channels=C, use_conv=False, dims=2)
    y_pool = jax.block_until_ready(mod_pool(x))
    assert y_pool.shape == (N, C, H // 2, W // 2), y_pool.shape
    y_pool_ref = x.reshape(N, C, H // 2, 2, W // 2, 2).mean(axis=(3, 5))
    assert jnp.allclose(y_pool, y_pool_ref, atol=1e-5, rtol=1e-5)

    print("KERNEL_OK")
</pallas_src>

<mosaic_0001>
module attributes {stable_mosaic.version = 11 : i64} {
  func.func @_conv3x3s2_kernel(%arg0: i32, %arg1: i32, %arg2: i32, %arg3: memref<1x1x9x2x9x16xf32, #tpu.memory_space<vmem>>, %arg4: memref<72x128xf32, #tpu.memory_space<vmem>>, %arg5: memref<1x128xf32, #tpu.memory_space<vmem>>, %arg6: memref<1x64x128xf32, #tpu.memory_space<vmem>>, %arg7: memref<64x72xf32, #tpu.memory_space<vmem>>) attributes {dimension_semantics = [#tpu.dimension_semantics<parallel>, #tpu.dimension_semantics<parallel>, #tpu.dimension_semantics<arbitrary>], iteration_bounds = array<i64: 2, 1, 1>, scalar_prefetch = 0 : i64, scratch_operands = 1 : i64, tpu.core_type = #tpu.core_type<tc>, window_params = [{transform_indices = @transform_0, window_bounds = array<i64: 1, 1, 9, 2, 9, 16>}, {pipeline_mode = #tpu.pipeline_mode<synchronous>, transform_indices = @transform_1, window_bounds = array<i64: 72, 128>}, {transform_indices = @transform_2, window_bounds = array<i64: 1, 128>}, {transform_indices = @transform_3, window_bounds = array<i64: 1, 64, 128>}]} {
    %c0_i32 = arith.constant 0 : i32
    %0 = arith.cmpi eq, %arg2, %c0_i32 : i32
    %1 = arith.extui %0 : i1 to i32
    %c0_i32_0 = arith.constant 0 : i32
    %2 = arith.cmpi ne, %1, %c0_i32_0 : i32
    scf.if %2 {
      %c0_8 = arith.constant 0 : index
      %c0_9 = arith.constant 0 : index
      %c0_10 = arith.constant 0 : index
      %c0_11 = arith.constant 0 : index
      %c0_12 = arith.constant 0 : index
      %c0_13 = arith.constant 0 : index
      %15 = vector.load %arg3[%c0_8, %c0_9, %c0_10, %c0_11, %c0_12, %c0_13] : memref<1x1x9x2x9x16xf32, #tpu.memory_space<vmem>>, vector<1x1x8x1x8x8xf32>
      %16 = vector.shape_cast %15 : vector<1x1x8x1x8x8xf32> to vector<8x8x8xf32>
      %17 = vector.shape_cast %16 : vector<8x8x8xf32> to vector<64x8xf32>
      %c0_14 = arith.constant 0 : index
      %c0_15 = arith.constant 0 : index
      %c0_16 = arith.constant 0 : index
      %c0_17 = arith.constant 0 : index
      %c0_18 = arith.constant 0 : index
      %c8 = arith.constant 8 : index
      %18 = vector.load %arg3[%c0_14, %c0_15, %c0_16, %c0_17, %c0_18, %c8] : memref<1x1x9x2x9x16xf32, #tpu.memory_space<vmem>>, vector<1x1x8x1x8x8xf32>
      %19 = vector.shape_cast %18 : vector<1x1x8x1x8x8xf32> to vector<8x8x8xf32>
      %20 = vector.shape_cast %19 : vector<8x8x8xf32> to vector<64x8xf32>
      %c0_19 = arith.constant 0 : index
      %c0_20 = arith.constant 0 : index
      %c0_21 = arith.constant 0 : index
      %c0_22 = arith.constant 0 : index
      %c1 = arith.constant 1 : index
      %c0_23 = arith.constant 0 : index
      %21 = vector.load %arg3[%c0_19, %c0_20, %c0_21, %c0_22, %c1, %c0_23] : memref<1x1x9x2x9x16xf32, #tpu.memory_space<vmem>>, vector<1x1x8x1x8x8xf32>
      %22 = vector.shape_cast %21 : vector<1x1x8x1x8x8xf32> to vector<8x8x8xf32>
      %23 = vector.shape_cast %22 : vector<8x8x8xf32> to vector<64x8xf32>
      %c0_24 = arith.constant 0 : index
      %c0_25 = arith.constant 0 : index
      %c0_26 = arith.constant 0 : index
      %c1_27 = arith.constant 1 : index
      %c0_28 = arith.constant 0 : index
      %c0_29 = arith.constant 0 : index
      %24 = vector.load %arg3[%c0_24, %c0_25, %c0_26, %c1_27, %c0_28, %c0_29] : memref<1x1x9x2x9x16xf32, #tpu.memory_space<vmem>>, vector<1x1x8x1x8x8xf32>
      %25 = vector.shape_cast %24 : vector<1x1x8x1x8x8xf32> to vector<8x8x8xf32>
      %26 = vector.shape_cast %25 : vector<8x8x8xf32> to vector<64x8xf32>
      %c0_30 = arith.constant 0 : index
      %c0_31 = arith.constant 0 : index
      %c0_32 = arith.constant 0 : index
      %c1_33 = arith.constant 1 : index
      %c0_34 = arith.constant 0 : index
      %c8_35 = arith.constant 8 : index
      %27 = vector.load %arg3[%c0_30, %c0_31, %c0_32, %c1_33, %c0_34, %c8_35] : memref<1x1x9x2x9x16xf32, #tpu.memory_space<vmem>>, vector<1x1x8x1x8x8xf32>
      %28 = vector.shape_cast %27 : vector<1x1x8x1x8x8xf32> to vector<8x8x8xf32>
      %29 = vector.shape_cast %28 : vector<8x8x8xf32> to vector<64x8xf32>
      %c0_36 = arith.constant 0 : index
      %c0_37 = arith.constant 0 : index
      %c0_38 = arith.constant 0 : index
      %c1_39 = arith.constant 1 : index
      %c1_40 = arith.constant 1 : index
      %c0_41 = arith.constant 0 : index
      %30 = vector.load %arg3[%c0_36, %c0_37, %c0_38, %c1_39, %c1_40, %c0_41] : memref<1x1x9x2x9x16xf32, #tpu.memory_space<vmem>>, vector<1x1x8x1x8x8xf32>
      %31 = vector.shape_cast %30 : vector<1x1x8x1x8x8xf32> to vector<8x8x8xf32>
      %32 = vector.shape_cast %31 : vector<8x8x8xf32> to vector<64x8xf32>
      %c0_42 = arith.constant 0 : index
      %c0_43 = arith.constant 0 : index
      %c1_44 = arith.constant 1 : index
      %c0_45 = arith.constant 0 : index
      %c0_46 = arith.constant 0 : index
      %c0_47 = arith.constant 0 : index
      %33 = vector.load %arg3[%c0_42, %c0_43, %c1_44, %c0_45, %c0_46, %c0_47] : memref<1x1x9x2x9x16xf32, #tpu.memory_space<vmem>>, vector<1x1x8x1x8x8xf32>
      %34 = vector.shape_cast %33 : vector<1x1x8x1x8x8xf32> to vector<8x8x8xf32>
      %35 = vector.shape_cast %34 : vector<8x8x8xf32> to vector<64x8xf32>
      %c0_48 = arith.constant 0 : index
      %c0_49 = arith.constant 0 : index
      %c1_50 = arith.constant 1 : index
      %c0_51 = arith.constant 0 : index
      %c0_52 = arith.constant 0 : index
      %c8_53 = arith.constant 8 : index
      %36 = vector.load %arg3[%c0_48, %c0_49, %c1_50, %c0_51, %c0_52, %c8_53] : memref<1x1x9x2x9x16xf32, #tpu.memory_space<vmem>>, vector<1x1x8x1x8x8xf32>
      %37 = vector.shape_cast %36 : vector<1x1x8x1x8x8xf32> to vector<8x8x8xf32>
      %38 = vector.shape_cast %37 : vector<8x8x8xf32> to vector<64x8xf32>
      %c0_54 = arith.constant 0 : index
      %c0_55 = arith.constant 0 : index
      %c1_56 = arith.constant 1 : index
      %c0_57 = arith.constant 0 : index
      %c1_58 = arith.constant 1 : index
      %c0_59 = arith.constant 0 : index
      %39 = vector.load %arg3[%c0_54, %c0_55, %c1_56, %c0_57, %c1_58, %c0_59] : memref<1x1x9x2x9x16xf32, #tpu.memory_space<vmem>>, vector<1x1x8x1x8x8xf32>
      %40 = vector.shape_cast %39 : vector<1x1x8x1x8x8xf32> to vector<8x8x8xf32>
      %41 = vector.shape_cast %40 : vector<8x8x8xf32> to vector<64x8xf32>
      %42 = tpu.concatenate %17, %20, %23, %26, %29, %32, %35, %38, %41 in 1 : vector<64x8xf32>, vector<64x8xf32>, vector<64x8xf32>, vector<64x8xf32>, vector<64x8xf32>, vector<64x8xf32>, vector<64x8xf32>, vector<64x8xf32>, vector<64x8xf32> -> vector<64x72xf32>
      %c0_60 = arith.constant 0 : index
      %c0_61 = arith.constant 0 : index
      %43 = vector.load %arg7[%c0_60, %c0_61] : memref<64x72xf32, #tpu.memory_space<vmem>>, vector<64x72xf32>
      tpu.vector_store %arg7[%c0_60, %c0_61], %42 {strides = array<i32>} : memref<64x72xf32, #tpu.memory_space<vmem>>, vector<64x72xf32>,
    } else {
    }
    %c128_i32 = arith.constant 128 : i32
    %3 = arith.muli %arg2, %c128_i32 : i32
    %4 = tpu.assume_multiple %3, 128 : i32
    %c0 = arith.constant 0 : index
    %5 = arith.index_cast %4 : i32 to index
    %6 = vector.load %arg4[%c0, %5] : memref<72x128xf32, #tpu.memory_space<vmem>>, vector<72x128xf32>
    %c0_1 = arith.constant 0 : index
    %c0_2 = arith.constant 0 : index
    %7 = vector.load %arg7[%c0_1, %c0_2] : memref<64x72xf32, #tpu.memory_space<vmem>>, vector<64x72xf32>
    %cst = arith.constant dense<0.000000e+00> : vector<64x128xf32>
    %8 = tpu.matmul %7, %6, %cst {dimension_numbers = #tpu.dot_dimension_numbers<[1], [0], [0], [1], [0, 0, 1, 1], [], []>} : vector<64x72xf32>, vector<72x128xf32>, vector<64x128xf32> -> vector<64x128xf32>
    %c0_3 = arith.constant 0 : index
    %c0_4 = arith.constant 0 : index
    %9 = vector.load %arg5[%c0_3, %c0_4] : memref<1x128xf32, #tpu.memory_space<vmem>>, vector<1x128xf32>
    %10 = vector.broadcast %9 : vector<1x128xf32> to vector<64x128xf32>
    %11 = arith.addf %8, %10 : vector<64x128xf32>
    %c0_5 = arith.constant 0 : index
    %c0_6 = arith.constant 0 : index
    %c0_7 = arith.constant 0 : index
    %12 = vector.load %arg6[%c0_5, %c0_6, %c0_7] : memref<1x64x128xf32, #tpu.memory_space<vmem>>, vector<1x64x128xf32>
    %13 = vector.shape_cast %12 : vector<1x64x128xf32> to vector<64x128xf32>
    %14 = vector.shape_cast %11 : vector<64x128xf32> to vector<1x64x128xf32>
    tpu.vector_store %arg6[%c0_5, %c0_6, %c0_7], %14 {strides = array<i32>} : memref<1x64x128xf32, #tpu.memory_space<vmem>>, vector<1x64x128xf32>,
    return
  }
  func.func @transform_0(%arg0: i32, %arg1: i32, %arg2: i32) -> (i32, i32, i32, i32, i32, i32) {
    %c0_i32 = arith.constant 0 : i32
    %c0_i32_0 = arith.constant 0 : i32
    %c0_i32_1 = arith.constant 0 : i32
    %c0_i32_2 = arith.constant 0 : i32
    %c0_i32_3 = arith.constant 0 : i32
    return %arg0, %arg1, %c0_i32, %c0_i32_0, %c0_i32_1, %c0_i32_2 : i32, i32, i32, i32, i32, i32
  }
  func.func @transform_1(%arg0: i32, %arg1: i32, %arg2: i32) -> (i32, i32) {
    %c0_i32 = arith.constant 0 : i32
    %c0_i32_0 = arith.constant 0 : i32
    %c0_i32_1 = arith.constant 0 : i32
    return %c0_i32, %c0_i32_0 : i32, i32
  }
  func.func @transform_2(%arg0: i32, %arg1: i32, %arg2: i32) -> (i32, i32) {
    %c0_i32 = arith.constant 0 : i32
    %c0_i32_0 = arith.constant 0 : i32
    return %c0_i32, %arg2 : i32, i32
  }
  func.func @transform_3(%arg0: i32, %arg1: i32, %arg2: i32) -> (i32, i32, i32) {
    %c0_i32 = arith.constant 0 : i32
    return %arg0, %arg1, %arg2 : i32, i32, i32
  }
}

</mosaic_0001>

<llo_original>
// kernel: tpu_custom_call.1
$region0: #{tpu_custom_call.1}
  #allocation0 [shape = 'u32[]', space=smem, size = 0x4, offset = 0x4, fixed_abs, tag = 'smem constant byte address 0x4 - core index']
  #allocation1 [shape = 'u32[144,128]{1,0:T(1,128)}', space=vmem, size = 0x12000, scoped, tag = 'internal scratch']
  #allocation2 [shape = 'f32[64,72]{1,0:T(8,128)}', space=vmem, size = 0x8000, scoped, tag = 'scratch operand']
  %s0 = inlined_call_operand.vmem [shape: f32[2,1,9,2,9,16], index: 0, kind: input, shape index: {}]
  %s1 = inlined_call_operand.vmem [shape: f32[72,128], index: 1, kind: input, shape index: {}]
  %s2 = inlined_call_operand.vmem [shape: f32[1,128], index: 2, kind: input, shape index: {}]
  %s3 = inlined_call_operand.hbm [shape: f32[2,64,128], index: 3, kind: output, shape index: {}]
  %s4 = sld [smem:[#allocation0]]
  $region49: #{tpu_custom_call.1} parent=0
    _
  %s6 = ssub.s32 1, %s4
  %s7 = scalar_select 0, %s6, %s4
  $region1: #{tpu_custom_call.1} parent=0
    #allocation3 [shape = 'u8[65536]{0}', space=vmem, size = 0x10000, scoped, tag = 'output window, operand 0']
    #allocation4 [shape = 's32[2]{0}', space=sflag, size = 0x8, scoped, tag = 'scoped memory for tpu_custom_call.1']
    %8 = vsyncpa [#allocation4], 0
    %s9 = scalar_lea.sflag [#allocation4], 1
    %10 = vsyncpa %s9, 0
    loop: start=0, step=1, limit=4
    $region2: #{tpu_custom_call.1} parent=1 // loop_pre_header
      _
    $region3: #{tpu_custom_call.1} parent=1 // loop_header
      %s12 = sphi 0, %s16
      %p13 = scmp.ge.s32.totalorder %s12, 4
      %s19 = sphi 0, %s38
      %s20 = sphi 0, %s34
      %s21 = sphi 0, %s30
      %s22 = sphi 0, %s19
      %s23 = sphi 0, %s20
      %s24 = sphi 0, %s21
      %s25 = sphi 0, %s22
      %s26 = sphi 0, %s23
      %s27 = sphi 0, %s24
      %s43 = sphi 0, %s45
      %s46 = sphi 0, %s43
      %s47 = sphi 0, %s46
      %s63 = sphi 0, %s47
      %s67 = sphi 0, %s67
      %s69 = sphi 0, %s67
      %s70 = sphi 0, %s69
      %s84 = sphi 0, %s70
      %s90 = sphi 0, %s92
      %s93 = sphi 0, %s90
      %s94 = sphi 0, %s93
      %s110 = sphi 0, %s94
      %s120 = sphi 0, %s122
      %s123 = sphi 0, %s120
      %s124 = sphi 0, %s123
      %s140 = sphi 0, %s124
    $region4: #{tpu_custom_call.1} parent=1 // loop_header_branch
      %15 = sbr.rel (%p13) target = $region8
    $region5: #{tpu_custom_call.1} parent=1 // loop_body
      %s17 = ssub.s32 %s12, 1
      %s18 = ssub.s32 %s12, 2
      %s28 = sadd.s32 1, %s21
      %p29 = scmp.ge.s32.totalorder %s28, 1
      %s30 = scalar_select %p29, 0, %s28
      %s31 = sadd.s32 1, %s20
      %s32 = scalar_select %p29, %s31, %s20
      %p33 = scmp.ge.s32.totalorder %s32, 1
      %s34 = scalar_select %p33, 0, %s32
      %s35 = sadd.s32 1, %s19
      %s36 = scalar_select %p33, %s35, %s19
      %p37 = scmp.ge.s32.totalorder %s36, 2
      %s38 = scalar_select %p37, 0, %s36
      %s39 = ssub.s32 %s19, %s38
      %s40 = ssub.s32 %s20, %s34
      %s41 = sor.u32 %s39, %s40
      %p42 = scmp.eq.s32.totalorder %s41, 0
      %s44 = sadd.s32 %s43, 1
      %s45 = scalar_select %p42, %s43, %s44
      %p48 = pneg %p42
      %p49 = scmp.eq.s32.totalorder %s12, 1
      %p50 = por %p48, %p49
      %p51 = scmp.ne.s32.totalorder %s43, %s46
      %p52 = scmp.eq.s32.totalorder %s12, 0
      %p53 = por %p51, %p52
      %p54 = scmp.ne.s32.totalorder %s43, %s46
      %p55 = scmp.eq.s32.totalorder %s17, 1
      %p56 = por %p54, %p55
      %p57 = scmp.ne.s32.totalorder %s46, %s47
      %p58 = scmp.eq.s32.totalorder %s17, 0
      %p59 = por %p57, %p58
      %p60 = scmp.ne.s32.totalorder %s46, %s47
      %p61 = scmp.eq.s32.totalorder %s18, 1
      %p62 = por %p60, %p61
      %p64 = scmp.ne.s32.totalorder %s47, %s63
      %p65 = scmp.eq.s32.totalorder %s18, 0
      %p66 = por %p64, %p65
      %s68 = sadd.s32 %s67, 1
      %p71 = scmp.eq.s32.totalorder %s12, 1
      %p72 = scmp.ne.s32.totalorder %s67, %s69
      %p73 = scmp.eq.s32.totalorder %s12, 0
      %p74 = por %p72, %p73
      %p75 = scmp.ne.s32.totalorder %s67, %s69
      %p76 = scmp.eq.s32.totalorder %s17, 1
      %p77 = por %p75, %p76
      %p78 = scmp.ne.s32.totalorder %s69, %s70
      %p79 = scmp.eq.s32.totalorder %s17, 0
      %p80 = por %p78, %p79
      %p81 = scmp.ne.s32.totalorder %s69, %s70
      %p82 = scmp.eq.s32.totalorder %s18, 1
      %p83 = por %p81, %p82
      %p85 = scmp.ne.s32.totalorder %s70, %s84
      %p86 = scmp.eq.s32.totalorder %s18, 0
      %p87 = por %p85, %p86
      %s88 = ssub.s32 %s21, %s30
      %p89 = scmp.eq.s32.totalorder %s88, 0
      %s91 = sadd.s32 %s90, 1
      %s92 = scalar_select %p89, %s90, %s91
      %p95 = pneg %p89
      %p96 = scmp.eq.s32.totalorder %s12, 1
      %p97 = por %p95, %p96
      %p98 = scmp.ne.s32.totalorder %s90, %s93
      %p99 = scmp.eq.s32.totalorder %s12, 0
      %p100 = por %p98, %p99
      %p101 = scmp.ne.s32.totalorder %s90, %s93
      %p102 = scmp.eq.s32.totalorder %s17, 1
      %p103 = por %p101, %p102
      %p104 = scmp.ne.s32.totalorder %s93, %s94
      %p105 = scmp.eq.s32.totalorder %s17, 0
      %p106 = por %p104, %p105
      %p107 = scmp.ne.s32.totalorder %s93, %s94
      %p108 = scmp.eq.s32.totalorder %s18, 1
      %p109 = por %p107, %p108
      %p111 = scmp.ne.s32.totalorder %s94, %s110
      %p112 = scmp.eq.s32.totalorder %s18, 0
      %p113 = por %p111, %p112
      %s114 = ssub.s32 %s19, %s38
      %s115 = ssub.s32 %s20, %s34
      %s116 = sor.u32 %s114, %s115
      %s117 = ssub.s32 %s21, %s30
      %s118 = sor.u32 %s116, %s117
      %p119 = scmp.eq.s32.totalorder %s118, 0
      %s121 = sadd.s32 %s120, 1
      %s122 = scalar_select %p119, %s120, %s121
      %p125 = pneg %p119
      %p126 = scmp.eq.s32.totalorder %s12, 1
      %p127 = por %p125, %p126
      %p128 = scmp.ne.s32.totalorder %s120, %s123
      %p129 = scmp.eq.s32.totalorder %s12, 0
      %p130 = por %p128, %p129
      %p131 = scmp.ne.s32.totalorder %s120, %s123
      %p132 = scmp.eq.s32.totalorder %s17, 1
      %p133 = por %p131, %p132
      %p134 = scmp.ne.s32.totalorder %s123, %s124
      %p135 = scmp.eq.s32.totalorder %s17, 0
      %p136 = por %p134, %p135
      %p137 = scmp.ne.s32.totalorder %s123, %s124
      %p138 = scmp.eq.s32.totalorder %s18, 1
      %p139 = por %p137, %p138
      %p141 = scmp.ne.s32.totalorder %s124, %s140
      %p142 = scmp.eq.s32.totalorder %s18, 0
      %p143 = por %p141, %p142
      %p144 = scmp.le.s32.totalorder 1, %s12
      %p145 = scmp.lt.s32.totalorder %s12, 3
      %p146 = pnand %p144, %p145
      %p147 = pneg %p146
      // Predicated region
      $region9: #{tpu_custom_call.1} parent=5 // pred_check
        _
      $region10: #{tpu_custom_call.1} parent=5 // pred_check_branch
        %149 = sbr.rel (%p146) target = $region12
      $region11: #{tpu_custom_call.1} parent=5 // pred_region
        %s150 = ssub.s32 %s12, 1
        // Predicated region
        $region13: #{tpu_custom_call.1} parent=11 // pred_check
          %p151 = pneg %p80
        $region14: #{tpu_custom_call.1} parent=11 // pred_check_branch
          %153 = sbr.rel (%p151) target = $region16
        $region15: #{tpu_custom_call.1} parent=11 // pred_region
          _
        $region16: #{tpu_custom_call.1} parent=11 // pred_fallthru
          _
        // Predicated region
        $region17: #{tpu_custom_call.1} parent=11 // pred_check
          %p154 = pneg %p106
        $region18: #{tpu_custom_call.1} parent=11 // pred_check_branch
          %156 = sbr.rel (%p154) target = $region20
        $region19: #{tpu_custom_call.1} parent=11 // pred_region
          %p157 = scmp.lt.s32.totalorder %s24, 0
          %s158 = scalar_select %p157, %s24, 0
          %s159 = scalar_lea.vmem %s2, %s158
        $region20: #{tpu_custom_call.1} parent=11 // pred_fallthru
          _
      $region12: #{tpu_custom_call.1} parent=5 // pred_fallthru
        _
      %p160 = scmp.lt.s32.totalorder %s12, 2
      // Predicated region
      $region21: #{tpu_custom_call.1} parent=5 // pred_check
        %p161 = pneg %p160
      $region22: #{tpu_custom_call.1} parent=5 // pred_check_branch
        %163 = sbr.rel (%p161) target = $region24
      $region23: #{tpu_custom_call.1} parent=5 // pred_region
        // Predicated region
        $region25: #{tpu_custom_call.1} parent=23 // pred_check
          %p164 = pneg %p53
        $region26: #{tpu_custom_call.1} parent=23 // pred_check_branch
          %166 = sbr.rel (%p164) target = $region28
        $region27: #{tpu_custom_call.1} parent=23 // pred_region
          %p167 = scmp.lt.s32.totalorder %s19, 1
          %s168 = scalar_select %p167, %s19, 1
          %p169 = scmp.lt.s32.totalorder %s20, 0
          %s170 = scalar_select %p169, %s20, 0
          %s171 = smul.addr %s170, 36
          %s172 = smul.addr %s168, 36
          %s173 = sadd.s32 %s171, %s172
          %s174 = smul.addr %s173, 8
          %s175 = scalar_lea.vmem %s0, %s174
        $region28: #{tpu_custom_call.1} parent=23 // pred_fallthru
          _
      $region24: #{tpu_custom_call.1} parent=5 // pred_fallthru
        _
      %p176 = scmp.le.s32.totalorder 1, %s12
      %p177 = scmp.lt.s32.totalorder %s12, 3
      %p178 = pnand %p176, %p177
      %p179 = pneg %p178
      // Predicated region
      $region29: #{tpu_custom_call.1} parent=5 // pred_check
        _
      $region30: #{tpu_custom_call.1} parent=5 // pred_check_branch
        %181 = sbr.rel (%p178) target = $region32
      $region31: #{tpu_custom_call.1} parent=5 // pred_region
        %s182 = ssub.s32 %s12, 1
        %p183 = scmp.lt.s32.totalorder %s22, 1
        %s184 = scalar_select %p183, %s22, 1
        %p185 = scmp.lt.s32.totalorder %s23, 0
        %s186 = scalar_select %p185, %s23, 0
        %s187 = smul.addr %s186, 36
        %s188 = smul.addr %s184, 36
        %s189 = sadd.s32 %s187, %s188
        %s190 = smul.addr %s189, 8
        %s191 = scalar_lea.vmem %s0, %s190
        %p192 = pneg %p59
        %p193 = pneg %p56
        %p194 = pneg %p80
        %p195 = pneg %p77
        %p196 = scmp.lt.s32.totalorder %s24, 0
        %s197 = scalar_select %p196, %s24, 0
        %s198 = scalar_lea.vmem %s2, %s197
        %p199 = pneg %p106
        %p200 = pneg %p103
        %p201 = pneg %p136
        %p202 = pneg %p133
        %s203 = sand.u32 %s123, 1
        %s204 = scalar_lea.sflag [#allocation4], %s203
        %s205 = sand.u32 %s123, 1
        %s206 = smul.addr %s205, 64
        %s207 = scalar_lea.vmem [#allocation3], %s206
        %p208 = scmp.lt.s32.totalorder %s22, 1
        %s209 = scalar_select %p208, %s22, 1
        %p210 = scmp.lt.s32.totalorder %s23, 0
        %s211 = scalar_select %p210, %s23, 0
        %s212 = smul.addr %s211, 36
        %s213 = smul.addr %s209, 36
        %s214 = sadd.s32 %s212, %s213
        %s215 = smul.addr %s214, 8
        %s216 = scalar_lea.vmem %s0, %s215
        %p217 = scmp.lt.s32.totalorder %s24, 0
        %s218 = scalar_select %p217, %s24, 0
        %s219 = scalar_lea.vmem %s2, %s218
        %s220 = smul.u32 8, %s23
        %p221 = scmp.eq.s32.totalorder %s24, 0
        // Predicated region
        $region33: #{tpu_custom_call.1} parent=31 // pred_check
          %p222 = pneg %p221
        $region34: #{tpu_custom_call.1} parent=31 // pred_check_branch
          %224 = sbr.rel (%p222) target = $region36
        $region35: #{tpu_custom_call.1} parent=31 // pred_region
          %v225 = vld [vmem:[%s216] sm:$0xff]
          %v226 = vld [vmem:[%s216 + $0x20] sm:$0xff]
          %v227 = vld [vmem:[%s216 + $0x40] sm:$0xff]
          %v228 = vld [vmem:[%s216 + $0x60] sm:$0xff]
          %v229 = vld [vmem:[%s216 + $0x80] sm:$0xff]
          %v230 = vld [vmem:[%s216 + $0xa0] sm:$0xff]
          %v231 = vld [vmem:[%s216 + $0xc0] sm:$0xff]
          %v232 = vld [vmem:[%s216 + $0xe0] sm:$0xff]
          %v233 = vld [vmem:[%s216 + $0x1] sm:$0xff]
          %v234 = vld [vmem:[%s216 + $0x21] sm:$0xff]
          %v235 = vld [vmem:[%s216 + $0x41] sm:$0xff]
          %v236 = vld [vmem:[%s216 + $0x61] sm:$0xff]
          %v237 = vld [vmem:[%s216 + $0x81] sm:$0xff]
          %v238 = vld [vmem:[%s216 + $0xa1] sm:$0xff]
          %v239 = vld [vmem:[%s216 + $0xc1] sm:$0xff]
          %v240 = vld [vmem:[%s216 + $0xe1] sm:$0xff]
          %s241 = scalar_lea.vmem %s216, 16
          %v242 = vld [vmem:[%s241] sm:$0xff]
          %v243 = vld [vmem:[%s241 + $0x20] sm:$0xff]
          %v244 = vld [vmem:[%s241 + $0x40] sm:$0xff]
          %v245 = vld [vmem:[%s241 + $0x60] sm:$0xff]
          %v246 = vld [vmem:[%s241 + $0x80] sm:$0xff]
          %v247 = vld [vmem:[%s241 + $0xa0] sm:$0xff]
          %v248 = vld [vmem:[%s241 + $0xc0] sm:$0xff]
          %v249 = vld [vmem:[%s241 + $0xe0] sm:$0xff]
          %v250 = vld [vmem:[%s241 + $0x1] sm:$0xff]
          %v251 = vld [vmem:[%s241 + $0x21] sm:$0xff]
          %v252 = vld [vmem:[%s241 + $0x41] sm:$0xff]
          %v253 = vld [vmem:[%s241 + $0x61] sm:$0xff]
          %v254 = vld [vmem:[%s241 + $0x81] sm:$0xff]
          %v255 = vld [vmem:[%s241 + $0xa1] sm:$0xff]
          %v256 = vld [vmem:[%s241 + $0xc1] sm:$0xff]
          %v257 = vld [vmem:[%s241 + $0xe1] sm:$0xff]
          %s258 = scalar_lea.vmem %s216, 32
          %v259 = vld [vmem:[%s258] sm:$0xff]
          %v260 = vld [vmem:[%s258 + $0x20] sm:$0xff]
          %v261 = vld [vmem:[%s258 + $0x40] sm:$0xff]
          %v262 = vld [vmem:[%s258 + $0x60] sm:$0xff]
          %v263 = vld [vmem:[%s258 + $0x80] sm:$0xff]
          %v264 = vld [vmem:[%s258 + $0xa0] sm:$0xff]
          %v265 = vld [vmem:[%s258 + $0xc0] sm:$0xff]
          %v266 = vld [vmem:[%s258 + $0xe0] sm:$0xff]
          %v267 = vld [vmem:[%s258 + $0x1] sm:$0xff]
          %v268 = vld [vmem:[%s258 + $0x21] sm:$0xff]
          %v269 = vld [vmem:[%s258 + $0x41] sm:$0xff]
          %v270 = vld [vmem:[%s258 + $0x61] sm:$0xff]
          %v271 = vld [vmem:[%s258 + $0x81] sm:$0xff]
          %v272 = vld [vmem:[%s258 + $0xa1] sm:$0xff]
          %v273 = vld [vmem:[%s258 + $0xc1] sm:$0xff]
          %v274 = vld [vmem:[%s258 + $0xe1] sm:$0xff]
          %283 = vrot.lane.b32.xlu0 %v233, 16
          %v284 = vpop.permute.xlu0 %283
          %285 = vrot.lane.b32.xlu0 %v234, 16
          %v286 = vpop.permute.xlu0 %285
          %287 = vrot.lane.b32.xlu0 %v235, 16
          %v288 = vpop.permute.xlu0 %287
          %289 = vrot.lane.b32.xlu0 %v236, 16
          %v290 = vpop.permute.xlu0 %289
          %291 = vrot.lane.b32.xlu0 %v237, 16
          %v292 = vpop.permute.xlu0 %291
          %293 = vrot.lane.b32.xlu0 %v238, 16
          %v294 = vpop.permute.xlu0 %293
          %295 = vrot.lane.b32.xlu0 %v239, 16
          %v296 = vpop.permute.xlu0 %295
          %297 = vrot.lane.b32.xlu0 %v240, 16
          %v298 = vpop.permute.xlu0 %297
          %315 = vrot.lane.b32.xlu0 %v242, 24
          %v316 = vpop.permute.xlu0 %315
          %317 = vrot.lane.b32.xlu0 %v243, 24
          %v318 = vpop.permute.xlu0 %317
          %319 = vrot.lane.b32.xlu0 %v244, 24
          %v320 = vpop.permute.xlu0 %319
          %321 = vrot.lane.b32.xlu0 %v245, 24
          %v322 = vpop.permute.xlu0 %321
          %323 = vrot.lane.b32.xlu0 %v246, 24
          %v324 = vpop.permute.xlu0 %323
          %325 = vrot.lane.b32.xlu0 %v247, 24
          %v326 = vpop.permute.xlu0 %325
          %327 = vrot.lane.b32.xlu0 %v248, 24
          %v328 = vpop.permute.xlu0 %327
          %329 = vrot.lane.b32.xlu0 %v249, 24
          %v330 = vpop.permute.xlu0 %329
          %347 = vrot.lane.b32.xlu0 %v250, 40
          %v348 = vpop.permute.xlu0 %347
          %349 = vrot.lane.b32.xlu0 %v251, 40
          %v350 = vpop.permute.xlu0 %349
          %351 = vrot.lane.b32.xlu0 %v252, 40
          %v352 = vpop.permute.xlu0 %351
          %353 = vrot.lane.b32.xlu0 %v253, 40
          %v354 = vpop.permute.xlu0 %353
          %355 = vrot.lane.b32.xlu0 %v254, 40
          %v356 = vpop.permute.xlu0 %355
          %357 = vrot.lane.b32.xlu0 %v255, 40
          %v358 = vpop.permute.xlu0 %357
          %359 = vrot.lane.b32.xlu0 %v256, 40
          %v360 = vpop.permute.xlu0 %359
          %361 = vrot.lane.b32.xlu0 %v257, 40
          %v362 = vpop.permute.xlu0 %361
          %379 = vrot.lane.b32.xlu0 %v259, 48
          %v380 = vpop.permute.xlu0 %379
          %381 = vrot.lane.b32.xlu0 %v260, 48
          %v382 = vpop.permute.xlu0 %381
          %383 = vrot.lane.b32.xlu0 %v261, 48
          %v384 = vpop.permute.xlu0 %383
          %385 = vrot.lane.b32.xlu0 %v262, 48
          %v386 = vpop.permute.xlu0 %385
          %387 = vrot.lane.b32.xlu0 %v263, 48
          %v388 = vpop.permute.xlu0 %387
          %389 = vrot.lane.b32.xlu0 %v264, 48
          %v390 = vpop.permute.xlu0 %389
          %391 = vrot.lane.b32.xlu0 %v265, 48
          %v392 = vpop.permute.xlu0 %391
          %393 = vrot.lane.b32.xlu0 %v266, 48
          %v394 = vpop.permute.xlu0 %393
          %411 = vrot.lane.b32.xlu0 %v267, 64
          %v412 = vpop.permute.xlu0 %411
          %413 = vrot.lane.b32.xlu0 %v268, 64
          %v414 = vpop.permute.xlu0 %413
          %415 = vrot.lane.b32.xlu0 %v269, 64
          %v416 = vpop.permute.xlu0 %415
          %417 = vrot.lane.b32.xlu0 %v270, 64
          %v418 = vpop.permute.xlu0 %417
          %419 = vrot.lane.b32.xlu0 %v271, 64
          %v420 = vpop.permute.xlu0 %419
          %421 = vrot.lane.b32.xlu0 %v272, 64
          %v422 = vpop.permute.xlu0 %421
          %423 = vrot.lane.b32.xlu0 %v273, 64
          %v424 = vpop.permute.xlu0 %423
          %425 = vrot.lane.b32.xlu0 %v274, 64
          %v426 = vpop.permute.xlu0 %425
          %vm435 = vcmask 130048
          %v436 = vsel %vm435, %v225, %v284
          %v437 = vsel %vm435, %v226, %v286
          %v438 = vsel %vm435, %v227, %v288
          %v439 = vsel %vm435, %v228, %v290
          %v440 = vsel %vm435, %v229, %v292
          %v441 = vsel %vm435, %v230, %v294
          %v442 = vsel %vm435, %v231, %v296
          %v443 = vsel %vm435, %v232, %v298
          %vm444 = vcmask 195584
          %v445 = vsel %vm444, %v436, %v316
          %v446 = vsel %vm444, %v437, %v318
          %v447 = vsel %vm444, %v438, %v320
          %v448 = vsel %vm444, %v439, %v322
          %v449 = vsel %vm444, %v440, %v324
          %v450 = vsel %vm444, %v441, %v326
          %v451 = vsel %vm444, %v442, %v328
          %v452 = vsel %vm444, %v443, %v330
          %vm453 = vcmask 261120
          %v454 = vsel %vm453, %v445, %v316
          %v455 = vsel %vm453, %v446, %v318
          %v456 = vsel %vm453, %v447, %v320
          %v457 = vsel %vm453, %v448, %v322
          %v458 = vsel %vm453, %v449, %v324
          %v459 = vsel %vm453, %v450, %v326
          %v460 = vsel %vm453, %v451, %v328
          %v461 = vsel %vm453, %v452, %v330
          %vm462 = vcmask 326656
          %v463 = vsel %vm462, %v454, %v348
          %v464 = vsel %vm462, %v455, %v350
          %v465 = vsel %vm462, %v456, %v352
          %v466 = vsel %vm462, %v457, %v354
          %v467 = vsel %vm462, %v458, %v356
          %v468 = vsel %vm462, %v459, %v358
          %v469 = vsel %vm462, %v460, %v360
          %v470 = vsel %vm462, %v461, %v362
          %vm471 = vcmask 392192
          %v472 = vsel %vm471, %v463, %v380
          %v473 = vsel %vm471, %v464, %v382
          %v474 = vsel %vm471, %v465, %v384
          %v475 = vsel %vm471, %v466, %v386
          %v476 = vsel %vm471, %v467, %v388
          %v477 = vsel %vm471, %v468, %v390
          %v478 = vsel %vm471, %v469, %v392
          %v479 = vsel %vm471, %v470, %v394
          %vm480 = vcmask 457728
          %v481 = vsel %vm480, %v472, %v380
          %v482 = vsel %vm480, %v473, %v382
          %v483 = vsel %vm480, %v474, %v384
          %v484 = vsel %vm480, %v475, %v386
          %v485 = vsel %vm480, %v476, %v388
          %v486 = vsel %vm480, %v477, %v390
          %v487 = vsel %vm480, %v478, %v392
          %v488 = vsel %vm480, %v479, %v394
          %vm489 = vcmask 523264
          %v490 = vsel %vm489, %v481, %v412
          %v491 = vsel %vm489, %v482, %v414
          %v492 = vsel %vm489, %v483, %v416
          %v493 = vsel %vm489, %v484, %v418
          %v494 = vsel %vm489, %v485, %v420
          %v495 = vsel %vm489, %v486, %v422
          %v496 = vsel %vm489, %v487, %v424
          %v497 = vsel %vm489, %v488, %v426
          %vm498 = vcmask 588800
          %499 = vst.msk [vmem:[#allocation2] sm:$0xff] %vm498, %v490
          %500 = vst.msk [vmem:[#allocation2 + $0x8] sm:$0xff] %vm498, %v491
          %501 = vst.msk [vmem:[#allocation2 + $0x10] sm:$0xff] %vm498, %v492
          %502 = vst.msk [vmem:[#allocation2 + $0x18] sm:$0xff] %vm498, %v493
          %503 = vst.msk [vmem:[#allocation2 + $0x20] sm:$0xff] %vm498, %v494
          %504 = vst.msk [vmem:[#allocation2 + $0x28] sm:$0xff] %vm498, %v495
          %505 = vst.msk [vmem:[#allocation2 + $0x30] sm:$0xff] %vm498, %v496
          %506 = vst.msk [vmem:[#allocation2 + $0x38] sm:$0xff] %vm498, %v497
        $region36: #{tpu_custom_call.1} parent=31 // pred_fallthru
          _
        %s507 = smul.u32 %s24, 128
        %s508 = sshra.s32 %s507, 7
        %s509 = sand.u32 %s507, 127
        %s510 = scalar_lea.vmem %s1, %s508
        %v511 = vld [vmem:[%s510] sm:$0xff]
        %v512 = vld [vmem:[%s510 + $0x8] sm:$0xff]
        %v513 = vld [vmem:[%s510 + $0x10] sm:$0xff]
        %v514 = vld [vmem:[%s510 + $0x18] sm:$0xff]
        %v515 = vld [vmem:[%s510 + $0x20] sm:$0xff]
        %v516 = vld [vmem:[%s510 + $0x28] sm:$0xff]
        %v517 = vld [vmem:[%s510 + $0x30] sm:$0xff]
        %v518 = vld [vmem:[%s510 + $0x38] sm:$0xff]
        %v519 = vld [vmem:[%s510 + $0x40] sm:$0xff]
        %v520 = vld [vmem:[#allocation2] sm:$0xff]
        %v521 = vld [vmem:[#allocation2 + $0x8] sm:$0xff]
        %v522 = vld [vmem:[#allocation2 + $0x10] sm:$0xff]
        %v523 = vld [vmem:[#allocation2 + $0x18] sm:$0xff]
        %v524 = vld [vmem:[#allocation2 + $0x20] sm:$0xff]
        %v525 = vld [vmem:[#allocation2 + $0x28] sm:$0xff]
        %v526 = vld [vmem:[#allocation2 + $0x30] sm:$0xff]
        %v527 = vld [vmem:[#allocation2 + $0x38] sm:$0xff]
        %v528 = vld [vmem:[%s219] sm:$0x1]
        %v530 = vlaneseq
        %v531 = vshrl.u32 %v530, 7
        %v532 = vsub.s32 0, %v531
        %v533 = vrot.slane %v528, %v532
        %vm535 = vcmask 588800
        %v537 = vsel %vm535, %v520, 0
        %v540 = vsel %vm535, %v521, 0
        %v543 = vsel %vm535, %v522, 0
        %v546 = vsel %vm535, %v523, 0
        %v549 = vsel %vm535, %v524, 0
        %v552 = vsel %vm535, %v525, 0
        %v555 = vsel %vm535, %v526, 0
        %v558 = vsel %vm535, %v527, 0
        %560 = vmatprep.subr.mxu0 0.0
        %561 = vmatpush1.msra.mxu0 %v511
        %562 = vmatprep.subr.mxu0 0.0
        %563 = vmatpush1.msra.mxu0 %v512
        %564 = vmatprep.subr.mxu0 0.0
        %565 = vmatpush1.msra.mxu0 %v513
        %566 = vmatprep.subr.mxu0 0.0
        %567 = vmatpush1.msra.mxu0 %v514
        %568 = vmatprep.subr.mxu0 0.0
        %569 = vmatpush1.msra.mxu0 %v515
        %570 = vmatprep.subr.mxu0 0.0
        %571 = vmatpush1.msra.mxu0 %v516
        %572 = vmatprep.subr.mxu0 0.0
        %573 = vmatpush1.msra.mxu0 %v517
        %574 = vmatprep.subr.mxu0 0.0
        %575 = vmatpush1.msra.mxu0 %v518
        %576 = vmatprep.subr.mxu0 0.0
        %577 = vmatpush1.msra.mxu0 %v519
        %578 = vmatprep.subr.mxu0 0.0
        %579 = vmatpush1.msra.mxu0 0.0
        %580 = vmatprep.subr.mxu0 0.0
        %581 = vmatpush1.msra.mxu0 0.0
        %582 = vmatprep.subr.mxu0 0.0
        %583 = vmatpush1.msra.mxu0 0.0
        %584 = vmatprep.subr.mxu0 0.0
        %585 = vmatpush1.msra.mxu0 0.0
        %586 = vmatprep.subr.mxu0 0.0
        %587 = vmatpush1.msra.mxu0 0.0
        %588 = vmatprep.subr.mxu0 0.0
        %589 = vmatpush1.msra.mxu0 0.0
        %590 = vmatprep.subr.mxu0 0.0
        %591 = vmatpush1.msra.mxu0 0.0
        %592 = vmatprep.subr.mxu0 0.0
        %593 = vmatpush1.msra.mxu0 0.0
        %594 = vmatprep.subr.mxu0 0.0
        %595 = vmatpush1.msra.mxu0 0.0
        %596 = vmatprep.subr.mxu0 0.0
        %597 = vmatpush1.msra.mxu0 0.0
        %598 = vmatprep.subr.mxu0 0.0
        %599 = vmatpush1.msra.mxu0 0.0
        %600 = vmatprep.subr.mxu0 0.0
        %601 = vmatpush1.msra.mxu0 0.0
        %602 = vmatprep.subr.mxu0 0.0
        %603 = vmatpush1.msra.mxu0 0.0
        %604 = vmatprep.subr.mxu0 0.0
        %605 = vmatpush1.msra.mxu0 0.0
        %606 = vmatprep.subr.mxu0 0.0
        %607 = vmatpush1.msra.mxu0 0.0
        %608 = vmatprep.subr.mxu0 0.0
        %609 = vmatpush1.msra.mxu0 0.0
        %610 = vmatprep.subr.mxu0 0.0
        %611 = vmatpush1.msra.mxu0 0.0
        %612 = vmatprep.subr.mxu0 0.0
        %613 = vmatpush1.msra.mxu0 0.0
        %614 = vmatprep.subr.mxu0 0.0
        %615 = vmatpush1.msra.mxu0 0.0
        %616 = vmatprep.subr.mxu0 0.0
        %617 = vmatpush1.msra.mxu0 0.0
        %618 = vmatprep.subr.mxu0 0.0
        %619 = vmatpush1.msra.mxu0 0.0
        %620 = vmatprep.subr.mxu0 0.0
        %621 = vmatpush1.msra.mxu0 0.0
        %622 = vmatprep.subr.mxu0 0.0
        %623 = vmatpush1.msra.mxu0 0.0
        %624 = vmatprep.mubr.f32.mxu0 0.0
        %625 = vmatmul.mubr.f32.gmra.mrb[0].mxu0 %v537
        %v626 = vpop.f32.mrb[0].mxu0
        %v627 = vadd.f32 %v533, %v626
        %v628 = vpop.f32.mrb[0].mxu0
        %629 = vmatprep.mubr.f32.mxu0 0.0
        %630 = vmatmul.mubr.f32.gmra.mrb[0].mxu0 %v540
        %v631 = vpop.f32.mrb[0].mxu0
        %v632 = vadd.f32 %v533, %v631
        %v633 = vpop.f32.mrb[0].mxu0
        %634 = vmatprep.mubr.f32.mxu0 0.0
        %635 = vmatmul.mubr.f32.gmra.mrb[0].mxu0 %v543
        %v636 = vpop.f32.mrb[0].mxu0
        %v637 = vadd.f32 %v533, %v636
        %v638 = vpop.f32.mrb[0].mxu0
        %639 = vmatprep.mubr.f32.mxu0 0.0
        %640 = vmatmul.mubr.f32.gmra.mrb[0].mxu0 %v546
        %v641 = vpop.f32.mrb[0].mxu0
        %v642 = vadd.f32 %v533, %v641
        %v643 = vpop.f32.mrb[0].mxu0
        %644 = vmatprep.mubr.f32.mxu0 0.0
        %645 = vmatmul.mubr.f32.gmra.mrb[0].mxu0 %v549
        %v646 = vpop.f32.mrb[0].mxu0
        %v647 = vadd.f32 %v533, %v646
        %v648 = vpop.f32.mrb[0].mxu0
        %649 = vmatprep.mubr.f32.mxu0 0.0
        %650 = vmatmul.mubr.f32.gmra.mrb[0].mxu0 %v552
        %v651 = vpop.f32.mrb[0].mxu0
        %v652 = vadd.f32 %v533, %v651
        %v653 = vpop.f32.mrb[0].mxu0
        %654 = vmatprep.mubr.f32.mxu0 0.0
        %655 = vmatmul.mubr.f32.gmra.mrb[0].mxu0 %v555
        %v656 = vpop.f32.mrb[0].mxu0
        %v657 = vadd.f32 %v533, %v656
        %v658 = vpop.f32.mrb[0].mxu0
        %659 = vmatprep.mubr.f32.mxu0 0.0
        %660 = vmatmul.mubr.f32.gmra.mrb[0].mxu0 %v558
        %v661 = vpop.f32.mrb[0].mxu0
        %v662 = vadd.f32 %v533, %v661
        %v663 = vpop.f32.mrb[0].mxu0
        %664 = vdwg.mxu0
        %665 = vst [vmem:[%s207] sm:$0xff] %v627
        %666 = vst [vmem:[%s207 + $0x8] sm:$0xff] %v632
        %667 = vst [vmem:[%s207 + $0x10] sm:$0xff] %v637
        %668 = vst [vmem:[%s207 + $0x18] sm:$0xff] %v642
        %669 = vst [vmem:[%s207 + $0x20] sm:$0xff] %v647
        %670 = vst [vmem:[%s207 + $0x28] sm:$0xff] %v652
        %671 = vst [vmem:[%s207 + $0x30] sm:$0xff] %v657
        %672 = vst [vmem:[%s207 + $0x38] sm:$0xff] %v662
        %s673 = sand.u32 %s123, 1
        %s674 = scalar_lea.sflag [#allocation4], %s673
        %s675 = sand.u32 %s123, 1
        %s676 = smul.addr %s675, 64
        %s677 = scalar_lea.vmem [#allocation3], %s676
        // Predicated region
        $region37: #{tpu_custom_call.1} parent=31 // pred_check
          %p678 = pneg %p133
        $region38: #{tpu_custom_call.1} parent=31 // pred_check_branch
          %680 = sbr.rel (%p678) target = $region40
        $region39: #{tpu_custom_call.1} parent=31 // pred_region
          %s681 = smul.u32 8, %s23
          %s683 = ssub.s32 1024, 1024
          %684 = vsyncadd %s674, %s683
          %s685 = sadd.s32 %s24, %s681
          %s686 = smul.addr %s22, 8
          %s687 = sadd.s32 %s685, %s686
          %s688 = smul.addr %s687, 128
          %s689 = scalar_lea.hbm %s3, %s688
          %s690 = sshll.u32 %s677, 4
          %s691 = int_to_ptr.vmem [resolvable:$true] %s690
          %696 = dma.vmem_to_hbm [thread:$0]  %s691, 1024, %s689, %s674, 128, 128, 8
        $region40: #{tpu_custom_call.1} parent=31 // pred_fallthru
          _
      $region32: #{tpu_custom_call.1} parent=5 // pred_fallthru
        _
      %p697 = scmp.le.s32.totalorder 2, %s12
      // Predicated region
      $region41: #{tpu_custom_call.1} parent=5 // pred_check
        %p698 = pneg %p697
      $region42: #{tpu_custom_call.1} parent=5 // pred_check_branch
        %700 = sbr.rel (%p698) target = $region44
      $region43: #{tpu_custom_call.1} parent=5 // pred_region
        %s701 = ssub.s32 %s12, 2
        // Predicated region
        $region45: #{tpu_custom_call.1} parent=43 // pred_check
          %p702 = pneg %p139
        $region46: #{tpu_custom_call.1} parent=43 // pred_check_branch
          %704 = sbr.rel (%p702) target = $region48
        $region47: #{tpu_custom_call.1} parent=43 // pred_region
          %s705 = sand.u32 %s124, 1
          %s706 = scalar_lea.sflag [#allocation4], %s705
          %s707 = sand.u32 %s124, 1
          %s708 = smul.addr %s707, 64
          %s709 = scalar_lea.vmem [#allocation3], %s708
          %710 = dma.done %s706, 1024
        $region48: #{tpu_custom_call.1} parent=43 // pred_fallthru
          _
      $region44: #{tpu_custom_call.1} parent=5 // pred_fallthru
        _
    $region6: #{tpu_custom_call.1} parent=1 // loop_footer
      %s16 = sadd.s32 1, %s12
    $region7: #{tpu_custom_call.1} parent=1 // loop_footer_branch
      %11 = sbr.rel target = $region3
    $region8: #{tpu_custom_call.1} parent=1 // loop_exit
      _
    %711 = vsyncpa [#allocation4], 1
    %s712 = scalar_lea.sflag [#allocation4], 1
    %713 = vsyncpa %s712, 1

</llo_original>
